<compile_context>
chip_gen: v5e
topology: v5e:2x2
jax: 0.10.0
libtpu: 0.0.40
codegen_flags: <defaults>
</compile_context>

<pallas_src>
import math
from functools import partial

import jax
import jax.numpy as jnp
from jax.experimental import pallas as pl
from jax.experimental.pallas import tpu as pltpu

_HI = jax.lax.Precision.HIGHEST
_EPS = 1e-5          # InstanceNorm1d default eps
_TAPS = 15           # widest multi-scale branch kernel
_K1 = 9              # conv_1 kernel size
_HALO = _K1 // 2     # conv_1 padding


def _gelu_exact(x):
    # nn.GELU() default (approximate='none'): x * 0.5 * (1 + erf(x / sqrt(2)))
    return 0.5 * x * (1.0 + jax.lax.erf(x * (1.0 / math.sqrt(2.0))))


def _make_kernel(H, L, Lp, d):
    """One batch sample per grid step.  L static valid length, Lp lane-padded."""
    H4, H2 = 4 * H, 2 * H
    E = Lp + 2 * _HALO          # extended length of the branch-conv output
    R = 7 * d                   # receptive radius of the widest (K=15) branch

    def kernel(xp_ref, wbig_ref, bfilt_ref, wc1_ref, wc2_ref, bc2_ref,
               win_ref, bin_ref, out_ref):
        xp = xp_ref[0]                                     # (C_pad, E + 2R) f32

        # lane-validity masks (multiplicative, VPU-friendly)
        e_idx = jax.lax.broadcasted_iota(jnp.int32, (1, E), 1)
        mask_e = ((e_idx >= _HALO) & (e_idx < L + _HALO)).astype(jnp.float32)
        t_idx = jax.lax.broadcasted_iota(jnp.int32, (1, Lp), 1)
        mask_t = (t_idx < L).astype(jnp.float32)

        # ---- the 4 dilated branch convs (K=3/5/9/15) fused into ONE matmul --
        # im2col over the 15 dilated taps; computed on the extended range E so
        # conv_1 below needs no physical padding / scratch.
        a1 = jnp.concatenate(
            [xp[:, j * d: j * d + E] for j in range(_TAPS)], axis=0)
        filts = jnp.dot(wbig_ref[...], a1.astype(jnp.bfloat16),
                        preferred_element_type=jnp.float32)
        filts = (filts + bfilt_ref[...]) * mask_e          # (4H, E), zero outside [0,L)
        filts_b = filts.astype(jnp.bfloat16)

        # ---- conv_1 (K=9, pad=4, no bias) as ONE im2col matmul --------------
        a2 = jnp.concatenate(
            [filts_b[:, k: k + Lp] for k in range(_K1)], axis=0)   # (9*4H, Lp)
        c1 = jnp.dot(wc1_ref[...], a2, preferred_element_type=jnp.float32)
        c1 = c1 * mask_t                                   # (4H, Lp)

        # ---- chunk(2, dim=1) + InstanceNorm1d on the first half -------------
        nf = c1[:H2]
        inv_l = 1.0 / L
        mean = jnp.sum(nf, axis=1, keepdims=True) * inv_l
        var = jnp.sum(nf * nf, axis=1, keepdims=True) * inv_l - mean * mean
        nf = (nf - mean) * jax.lax.rsqrt(var + _EPS)
        merged = _gelu_exact(jnp.concatenate([nf, c1[H2:]], axis=0))  # (4H, Lp)

        # ---- conv_2 (1x1, bias) + GELU ---------------------------------------
        c2 = jnp.dot(wc2_ref[...], merged.astype(jnp.bfloat16),
                     preferred_element_type=jnp.float32) + bc2_ref[...]
        c2 = _gelu_exact(c2)                               # (H, Lp)

        # ---- residual: input_conv (1x1, bias) --------------------------------
        xv = xp[:, R + _HALO: R + _HALO + Lp].astype(jnp.bfloat16)   # (C_pad, Lp)
        res = jnp.dot(win_ref[...], xv,
                      preferred_element_type=jnp.float32) + bin_ref[...]

        out_ref[0] = (c2 + res).astype(out_ref.dtype)

    return kernel


@partial(jax.jit, static_argnames=("dilation",))
def multi_scale_block(x, params, dilation=1):
    """x: (N, C_in, L) float32.  Returns (N, H, L) float32."""
    N, C_in, L = x.shape
    H = params["w_in"].shape[0]
    H4 = 4 * H
    d = dilation
    R = 7 * d

    # lane-dense working length (output lane dim is a multiple of 128)
    Lp = ((L + 127) // 128) * 128
    E = Lp + 2 * _HALO
    T = E + 2 * R
    C_pad = ((C_in + 7) // 8) * 8        # sublane-align channels

    # one contiguous zero-padded input copy: column c <-> original index c-(R+HALO)
    xp = jnp.zeros((N, C_pad, T), jnp.float32)
    xp = xp.at[:, :C_in, R + _HALO: R + _HALO + L].set(x.astype(jnp.float32))

    # ---- combine the 4 branch convs into one (4H, 15*C_pad) weight ----------
    w_big = jnp.zeros((H4, _TAPS, C_pad), jnp.float32)
    for b, key in enumerate(("w3", "w5", "w9", "w15")):
        w = params[key]                                   # (H, C_in, K)
        K = w.shape[-1]
        start = (_TAPS - K) // 2                          # center smaller kernels
        w_big = w_big.at[b * H:(b + 1) * H, start:start + K, :C_in].set(
            jnp.transpose(w, (0, 2, 1)))
    w_big = w_big.reshape(H4, _TAPS * C_pad).astype(jnp.bfloat16)
    b_filt = jnp.concatenate([params["b3"], params["b5"],
                              params["b9"], params["b15"]]).reshape(H4, 1)
    b_filt = b_filt.astype(jnp.float32)

    # conv_1 weight as (4H, 9*4H) im2col matrix
    w_c1 = jnp.transpose(params["w_c1"], (0, 2, 1)).reshape(H4, _K1 * H4)
    w_c1 = w_c1.astype(jnp.bfloat16)

    # 1x1 convs
    w_c2 = params["w_c2"][:, :, 0].astype(jnp.bfloat16)            # (H, 4H)
    b_c2 = params["b_c2"].reshape(H, 1).astype(jnp.float32)
    w_in = jnp.zeros((H, C_pad), jnp.float32).at[:, :C_in].set(
        params["w_in"][:, :, 0]).astype(jnp.bfloat16)
    b_in = params["b_in"].reshape(H, 1).astype(jnp.float32)

    kernel = _make_kernel(H, L, Lp, d)

    def _full(shape):
        n_dims = len(shape)
        return pl.BlockSpec(shape, lambda n: (0,) * n_dims)

    out = pl.pallas_call(
        kernel,
        out_shape=jax.ShapeDtypeStruct((N, H, Lp), jnp.float32),
        grid_spec=pltpu.PrefetchScalarGridSpec(
            num_scalar_prefetch=0,
            grid=(N,),
            in_specs=[
                pl.BlockSpec((1, C_pad, T), lambda n: (n, 0, 0)),   # x (padded)
                _full(w_big.shape), _full(b_filt.shape),            # branches
                _full(w_c1.shape),                                  # conv_1
                _full(w_c2.shape), _full(b_c2.shape),               # conv_2
                _full(w_in.shape), _full(b_in.shape),               # input_conv
            ],
            out_specs=pl.BlockSpec((1, H, Lp), lambda n: (n, 0, 0)),
        ),
        compiler_params=pltpu.CompilerParams(
            dimension_semantics=("parallel",)),
    )(xp, w_big, b_filt, w_c1, w_c2, b_c2, w_in, b_in)
    return out[:, :, :L]


def ref_forward(x, params, dilation=1):
    """Pure-JAX (f32, HIGHEST) reference of MultiScaleBlock.forward."""
    d = dilation

    def conv(y, w, b, dil, pad):
        out = jax.lax.conv_general_dilated(
            y, w, window_strides=(1,), padding=[(pad, pad)],
            rhs_dilation=(dil,),
            dimension_numbers=('NCH', 'OIH', 'NCH'), precision=_HI)
        return out if b is None else out + b[None, :, None]

    residual = conv(x, params["w_in"], params["b_in"], 1, 0)
    filts = jnp.concatenate([
        conv(x, params["w3"], params["b3"], d, d),
        conv(x, params["w5"], params["b5"], d, 2 * d),
        conv(x, params["w9"], params["b9"], d, 4 * d),
        conv(x, params["w15"], params["b15"], d, 7 * d)], axis=1)
    c1 = conv(filts, params["w_c1"], None, 1, 4)
    h2 = c1.shape[1] // 2
    nf, rest = c1[:, :h2], c1[:, h2:]
    mean = nf.mean(axis=2, keepdims=True)
    var = nf.var(axis=2, keepdims=True)                  # biased, like InstanceNorm
    nf = (nf - mean) / jnp.sqrt(var + _EPS)
    merged = _gelu_exact(jnp.concatenate([nf, rest], axis=1))
    out = _gelu_exact(conv(merged, params["w_c2"], params["b_c2"], 1, 0))
    return out + residual


if __name__ == "__main__":
    N, C_in, H, L, d = 2, 4, 8, 16, 1     # hidden_size=8 (divisible by 4)

    key = jax.random.PRNGKey(0)
    ks = jax.random.split(key, 14)

    def w(k, shape):
        return 0.1 * jax.random.normal(k, shape, jnp.float32)

    params = dict(
        w_in=w(ks[0], (H, C_in, 1)), b_in=w(ks[1], (H,)),
        w3=w(ks[2], (H, C_in, 3)),   b3=w(ks[3], (H,)),
        w5=w(ks[4], (H, C_in, 5)),   b5=w(ks[5], (H,)),
        w9=w(ks[6], (H, C_in, 9)),   b9=w(ks[7], (H,)),
        w15=w(ks[8], (H, C_in, 15)), b15=w(ks[9], (H,)),
        w_c1=w(ks[10], (4 * H, 4 * H, 9)),                 # bias=False
        w_c2=w(ks[11], (H, 4 * H, 1)), b_c2=w(ks[12], (H,)),
    )
    x = jax.random.normal(ks[13], (N, C_in, L), jnp.float32)

    out = jax.block_until_ready(multi_scale_block(x, params, dilation=d))
    ref = ref_forward(x, params, dilation=d)

    assert out.shape == ref.shape == (N, H, L), (out.shape, ref.shape)
    err = float(jnp.max(jnp.abs(out - ref)))
    assert err < 5e-2, f"max abs err {err}"    # bf16 matmuls vs f32 reference
    print("KERNEL_OK")
</pallas_src>

<mosaic_0001>
module attributes {stable_mosaic.version = 11 : i64} {
  func.func @kernel(%arg0: i32, %arg1: memref<1x8x150xf32, #tpu.memory_space<vmem>>, %arg2: memref<32x120xbf16, #tpu.memory_space<vmem>>, %arg3: memref<32x1xf32, #tpu.memory_space<vmem>>, %arg4: memref<32x288xbf16, #tpu.memory_space<vmem>>, %arg5: memref<8x32xbf16, #tpu.memory_space<vmem>>, %arg6: memref<8x1xf32, #tpu.memory_space<vmem>>, %arg7: memref<8x8xbf16, #tpu.memory_space<vmem>>, %arg8: memref<8x1xf32, #tpu.memory_space<vmem>>, %arg9: memref<1x8x128xf32, #tpu.memory_space<vmem>>) attributes {dimension_semantics = [#tpu.dimension_semantics<parallel>], iteration_bounds = array<i64: 2>, scalar_prefetch = 0 : i64, scratch_operands = 0 : i64, tpu.core_type = #tpu.core_type<tc>, window_params = [{transform_indices = @transform_0, window_bounds = array<i64: 1, 8, 150>}, {pipeline_mode = #tpu.pipeline_mode<synchronous>, transform_indices = @transform_1, window_bounds = array<i64: 32, 120>}, {pipeline_mode = #tpu.pipeline_mode<synchronous>, transform_indices = @transform_2, window_bounds = array<i64: 32, 1>}, {pipeline_mode = #tpu.pipeline_mode<synchronous>, transform_indices = @transform_3, window_bounds = array<i64: 32, 288>}, {pipeline_mode = #tpu.pipeline_mode<synchronous>, transform_indices = @transform_4, window_bounds = array<i64: 8, 32>}, {pipeline_mode = #tpu.pipeline_mode<synchronous>, transform_indices = @transform_5, window_bounds = array<i64: 8, 1>}, {pipeline_mode = #tpu.pipeline_mode<synchronous>, transform_indices = @transform_6, window_bounds = array<i64: 8, 8>}, {pipeline_mode = #tpu.pipeline_mode<synchronous>, transform_indices = @transform_7, window_bounds = array<i64: 8, 1>}, {transform_indices = @transform_8, window_bounds = array<i64: 1, 8, 128>}]} {
    %c0 = arith.constant 0 : index
    %c0_0 = arith.constant 0 : index
    %c0_1 = arith.constant 0 : index
    %0 = vector.load %arg1[%c0, %c0_0, %c0_1] : memref<1x8x150xf32, #tpu.memory_space<vmem>>, vector<1x8x150xf32>
    %1 = vector.shape_cast %0 : vector<1x8x150xf32> to vector<8x150xf32>
    %2 = tpu.iota {dimensions = array<i32: 1>} : vector<1x136xi32>
    %c4_i32 = arith.constant 4 : i32
    %3 = vector.broadcast %c4_i32 : i32 to vector<1x136xi32>
    %4 = arith.cmpi sge, %2, %3 : vector<1x136xi32>
    %c20_i32 = arith.constant 20 : i32
    %5 = vector.broadcast %c20_i32 : i32 to vector<1x136xi32>
    %6 = arith.cmpi slt, %2, %5 : vector<1x136xi32>
    %7 = arith.andi %4, %6 : vector<1x136xi1>
    %8 = arith.extui %7 : vector<1x136xi1> to vector<1x136xi32>
    %9 = arith.sitofp %8 : vector<1x136xi32> to vector<1x136xf32>
    %10 = tpu.iota {dimensions = array<i32: 1>} : vector<1x128xi32>
    %c16_i32 = arith.constant 16 : i32
    %11 = vector.broadcast %c16_i32 : i32 to vector<1x128xi32>
    %12 = arith.cmpi slt, %10, %11 : vector<1x128xi32>
    %13 = arith.extui %12 : vector<1x128xi1> to vector<1x128xi32>
    %14 = arith.sitofp %13 : vector<1x128xi32> to vector<1x128xf32>
    %15 = vector.extract_strided_slice %1 {offsets = [0, 0], sizes = [8, 136], strides = [1, 1]} : vector<8x150xf32> to vector<8x136xf32>
    %16 = vector.extract_strided_slice %1 {offsets = [0, 1], sizes = [8, 136], strides = [1, 1]} : vector<8x150xf32> to vector<8x136xf32>
    %17 = vector.extract_strided_slice %1 {offsets = [0, 2], sizes = [8, 136], strides = [1, 1]} : vector<8x150xf32> to vector<8x136xf32>
    %18 = vector.extract_strided_slice %1 {offsets = [0, 3], sizes = [8, 136], strides = [1, 1]} : vector<8x150xf32> to vector<8x136xf32>
    %19 = vector.extract_strided_slice %1 {offsets = [0, 4], sizes = [8, 136], strides = [1, 1]} : vector<8x150xf32> to vector<8x136xf32>
    %20 = vector.extract_strided_slice %1 {offsets = [0, 5], sizes = [8, 136], strides = [1, 1]} : vector<8x150xf32> to vector<8x136xf32>
    %21 = vector.extract_strided_slice %1 {offsets = [0, 6], sizes = [8, 136], strides = [1, 1]} : vector<8x150xf32> to vector<8x136xf32>
    %22 = vector.extract_strided_slice %1 {offsets = [0, 7], sizes = [8, 136], strides = [1, 1]} : vector<8x150xf32> to vector<8x136xf32>
    %23 = vector.extract_strided_slice %1 {offsets = [0, 8], sizes = [8, 136], strides = [1, 1]} : vector<8x150xf32> to vector<8x136xf32>
    %24 = vector.extract_strided_slice %1 {offsets = [0, 9], sizes = [8, 136], strides = [1, 1]} : vector<8x150xf32> to vector<8x136xf32>
    %25 = vector.extract_strided_slice %1 {offsets = [0, 10], sizes = [8, 136], strides = [1, 1]} : vector<8x150xf32> to vector<8x136xf32>
    %26 = vector.extract_strided_slice %1 {offsets = [0, 11], sizes = [8, 136], strides = [1, 1]} : vector<8x150xf32> to vector<8x136xf32>
    %27 = vector.extract_strided_slice %1 {offsets = [0, 12], sizes = [8, 136], strides = [1, 1]} : vector<8x150xf32> to vector<8x136xf32>
    %28 = vector.extract_strided_slice %1 {offsets = [0, 13], sizes = [8, 136], strides = [1, 1]} : vector<8x150xf32> to vector<8x136xf32>
    %29 = vector.extract_strided_slice %1 {offsets = [0, 14], sizes = [8, 136], strides = [1, 1]} : vector<8x150xf32> to vector<8x136xf32>
    %30 = tpu.concatenate %15, %16, %17, %18, %19, %20, %21, %22, %23, %24, %25, %26, %27, %28, %29 in 0 : vector<8x136xf32>, vector<8x136xf32>, vector<8x136xf32>, vector<8x136xf32>, vector<8x136xf32>, vector<8x136xf32>, vector<8x136xf32>, vector<8x136xf32>, vector<8x136xf32>, vector<8x136xf32>, vector<8x136xf32>, vector<8x136xf32>, vector<8x136xf32>, vector<8x136xf32>, vector<8x136xf32> -> vector<120x136xf32>
    %c0_2 = arith.constant 0 : index
    %c0_3 = arith.constant 0 : index
    %31 = vector.load %arg2[%c0_2, %c0_3] : memref<32x120xbf16, #tpu.memory_space<vmem>>, vector<32x120xbf16>
    %32 = arith.truncf %30 : vector<120x136xf32> to vector<120x136xbf16>
    %cst = arith.constant dense<0.000000e+00> : vector<32x136xf32>
    %33 = tpu.matmul %31, %32, %cst {dimension_numbers = #tpu.dot_dimension_numbers<[1], [0], [0], [1], [0, 0, 1, 1], [], []>} : vector<32x120xbf16>, vector<120x136xbf16>, vector<32x136xf32> -> vector<32x136xf32>
    %c0_4 = arith.constant 0 : index
    %c0_5 = arith.constant 0 : index
    %34 = vector.load %arg3[%c0_4, %c0_5] : memref<32x1xf32, #tpu.memory_space<vmem>>, vector<32x1xf32>
    %35 = vector.broadcast %34 : vector<32x1xf32> to vector<32x136xf32>
    %36 = arith.addf %33, %35 : vector<32x136xf32>
    %37 = vector.broadcast %9 : vector<1x136xf32> to vector<32x136xf32>
    %38 = arith.mulf %36, %37 : vector<32x136xf32>
    %39 = arith.truncf %38 : vector<32x136xf32> to vector<32x136xbf16>
    %40 = vector.extract_strided_slice %39 {offsets = [0, 0], sizes = [32, 128], strides = [1, 1]} : vector<32x136xbf16> to vector<32x128xbf16>
    %41 = vector.extract_strided_slice %39 {offsets = [0, 1], sizes = [32, 128], strides = [1, 1]} : vector<32x136xbf16> to vector<32x128xbf16>
    %42 = vector.extract_strided_slice %39 {offsets = [0, 2], sizes = [32, 128], strides = [1, 1]} : vector<32x136xbf16> to vector<32x128xbf16>
    %43 = vector.extract_strided_slice %39 {offsets = [0, 3], sizes = [32, 128], strides = [1, 1]} : vector<32x136xbf16> to vector<32x128xbf16>
    %44 = vector.extract_strided_slice %39 {offsets = [0, 4], sizes = [32, 128], strides = [1, 1]} : vector<32x136xbf16> to vector<32x128xbf16>
    %45 = vector.extract_strided_slice %39 {offsets = [0, 5], sizes = [32, 128], strides = [1, 1]} : vector<32x136xbf16> to vector<32x128xbf16>
    %46 = vector.extract_strided_slice %39 {offsets = [0, 6], sizes = [32, 128], strides = [1, 1]} : vector<32x136xbf16> to vector<32x128xbf16>
    %47 = vector.extract_strided_slice %39 {offsets = [0, 7], sizes = [32, 128], strides = [1, 1]} : vector<32x136xbf16> to vector<32x128xbf16>
    %48 = vector.extract_strided_slice %39 {offsets = [0, 8], sizes = [32, 128], strides = [1, 1]} : vector<32x136xbf16> to vector<32x128xbf16>
    %49 = tpu.concatenate %40, %41, %42, %43, %44, %45, %46, %47, %48 in 0 : vector<32x128xbf16>, vector<32x128xbf16>, vector<32x128xbf16>, vector<32x128xbf16>, vector<32x128xbf16>, vector<32x128xbf16>, vector<32x128xbf16>, vector<32x128xbf16>, vector<32x128xbf16> -> vector<288x128xbf16>
    %c0_6 = arith.constant 0 : index
    %c0_7 = arith.constant 0 : index
    %50 = vector.load %arg4[%c0_6, %c0_7] : memref<32x288xbf16, #tpu.memory_space<vmem>>, vector<32x288xbf16>
    %cst_8 = arith.constant dense<0.000000e+00> : vector<32x128xf32>
    %51 = tpu.matmul %50, %49, %cst_8 {dimension_numbers = #tpu.dot_dimension_numbers<[1], [0], [0], [1], [0, 0, 1, 1], [], []>} : vector<32x288xbf16>, vector<288x128xbf16>, vector<32x128xf32> -> vector<32x128xf32>
    %52 = vector.broadcast %14 : vector<1x128xf32> to vector<32x128xf32>
    %53 = arith.mulf %51, %52 : vector<32x128xf32>
    %54 = vector.extract_strided_slice %53 {offsets = [0, 0], sizes = [16, 128], strides = [1, 1]} : vector<32x128xf32> to vector<16x128xf32>
    %cst_9 = arith.constant dense<0.000000e+00> : vector<16xf32>
    %55 = vector.multi_reduction <add>, %54, %cst_9 [1] : vector<16x128xf32> to vector<16xf32>
    %56 = vector.shape_cast %55 : vector<16xf32> to vector<16x1xf32>
    %cst_10 = arith.constant 6.250000e-02 : f32
    %57 = vector.broadcast %cst_10 : f32 to vector<16x1xf32>
    %58 = arith.mulf %56, %57 : vector<16x1xf32>
    %59 = arith.mulf %54, %54 : vector<16x128xf32>
    %cst_11 = arith.constant dense<0.000000e+00> : vector<16xf32>
    %60 = vector.multi_reduction <add>, %59, %cst_11 [1] : vector<16x128xf32> to vector<16xf32>
    %61 = vector.shape_cast %60 : vector<16xf32> to vector<16x1xf32>
    %cst_12 = arith.constant 6.250000e-02 : f32
    %62 = vector.broadcast %cst_12 : f32 to vector<16x1xf32>
    %63 = arith.mulf %61, %62 : vector<16x1xf32>
    %64 = arith.mulf %58, %58 : vector<16x1xf32>
    %65 = arith.subf %63, %64 : vector<16x1xf32>
    %66 = vector.broadcast %58 : vector<16x1xf32> to vector<16x128xf32>
    %67 = arith.subf %54, %66 : vector<16x128xf32>
    %cst_13 = arith.constant 9.99999974E-6 : f32
    %68 = vector.broadcast %cst_13 : f32 to vector<16x1xf32>
    %69 = arith.addf %65, %68 : vector<16x1xf32>
    %70 = math.rsqrt %69 : vector<16x1xf32>
    %71 = vector.broadcast %70 : vector<16x1xf32> to vector<16x128xf32>
    %72 = arith.mulf %67, %71 : vector<16x128xf32>
    %73 = vector.extract_strided_slice %53 {offsets = [16, 0], sizes = [16, 128], strides = [1, 1]} : vector<32x128xf32> to vector<16x128xf32>
    %74 = tpu.concatenate %72, %73 in 0 : vector<16x128xf32>, vector<16x128xf32> -> vector<32x128xf32>
    %cst_14 = arith.constant 5.000000e-01 : f32
    %75 = vector.broadcast %cst_14 : f32 to vector<32x128xf32>
    %76 = arith.mulf %75, %74 : vector<32x128xf32>
    %cst_15 = arith.constant 0.707106769 : f32
    %77 = vector.broadcast %cst_15 : f32 to vector<32x128xf32>
    %78 = arith.mulf %74, %77 : vector<32x128xf32>
    %79 = math.erf %78 : vector<32x128xf32>
    %cst_16 = arith.constant 1.000000e+00 : f32
    %80 = vector.broadcast %cst_16 : f32 to vector<32x128xf32>
    %81 = arith.addf %80, %79 : vector<32x128xf32>
    %82 = arith.mulf %76, %81 : vector<32x128xf32>
    %c0_17 = arith.constant 0 : index
    %c0_18 = arith.constant 0 : index
    %83 = vector.load %arg5[%c0_17, %c0_18] : memref<8x32xbf16, #tpu.memory_space<vmem>>, vector<8x32xbf16>
    %84 = arith.truncf %82 : vector<32x128xf32> to vector<32x128xbf16>
    %cst_19 = arith.constant dense<0.000000e+00> : vector<8x128xf32>
    %85 = tpu.matmul %83, %84, %cst_19 {dimension_numbers = #tpu.dot_dimension_numbers<[1], [0], [0], [1], [0, 0, 1, 1], [], []>} : vector<8x32xbf16>, vector<32x128xbf16>, vector<8x128xf32> -> vector<8x128xf32>
    %c0_20 = arith.constant 0 : index
    %c0_21 = arith.constant 0 : index
    %86 = vector.load %arg6[%c0_20, %c0_21] : memref<8x1xf32, #tpu.memory_space<vmem>>, vector<8x1xf32>
    %87 = vector.broadcast %86 : vector<8x1xf32> to vector<8x128xf32>
    %88 = arith.addf %85, %87 : vector<8x128xf32>
    %cst_22 = arith.constant 5.000000e-01 : f32
    %89 = vector.broadcast %cst_22 : f32 to vector<8x128xf32>
    %90 = arith.mulf %89, %88 : vector<8x128xf32>
    %cst_23 = arith.constant 0.707106769 : f32
    %91 = vector.broadcast %cst_23 : f32 to vector<8x128xf32>
    %92 = arith.mulf %88, %91 : vector<8x128xf32>
    %93 = math.erf %92 : vector<8x128xf32>
    %cst_24 = arith.constant 1.000000e+00 : f32
    %94 = vector.broadcast %cst_24 : f32 to vector<8x128xf32>
    %95 = arith.addf %94, %93 : vector<8x128xf32>
    %96 = arith.mulf %90, %95 : vector<8x128xf32>
    %97 = vector.extract_strided_slice %1 {offsets = [0, 11], sizes = [8, 128], strides = [1, 1]} : vector<8x150xf32> to vector<8x128xf32>
    %98 = arith.truncf %97 : vector<8x128xf32> to vector<8x128xbf16>
    %c0_25 = arith.constant 0 : index
    %c0_26 = arith.constant 0 : index
    %99 = vector.load %arg7[%c0_25, %c0_26] : memref<8x8xbf16, #tpu.memory_space<vmem>>, vector<8x8xbf16>
    %cst_27 = arith.constant dense<0.000000e+00> : vector<8x128xf32>
    %100 = tpu.matmul %99, %98, %cst_27 {dimension_numbers = #tpu.dot_dimension_numbers<[1], [0], [0], [1], [0, 0, 1, 1], [], []>} : vector<8x8xbf16>, vector<8x128xbf16>, vector<8x128xf32> -> vector<8x128xf32>
    %c0_28 = arith.constant 0 : index
    %c0_29 = arith.constant 0 : index
    %101 = vector.load %arg8[%c0_28, %c0_29] : memref<8x1xf32, #tpu.memory_space<vmem>>, vector<8x1xf32>
    %102 = vector.broadcast %101 : vector<8x1xf32> to vector<8x128xf32>
    %103 = arith.addf %100, %102 : vector<8x128xf32>
    %104 = arith.addf %96, %103 : vector<8x128xf32>
    %c0_30 = arith.constant 0 : index
    %c0_31 = arith.constant 0 : index
    %c0_32 = arith.constant 0 : index
    %105 = vector.load %arg9[%c0_30, %c0_31, %c0_32] : memref<1x8x128xf32, #tpu.memory_space<vmem>>, vector<1x8x128xf32>
    %106 = vector.shape_cast %105 : vector<1x8x128xf32> to vector<8x128xf32>
    %107 = vector.shape_cast %104 : vector<8x128xf32> to vector<1x8x128xf32>
    tpu.vector_store %arg9[%c0_30, %c0_31, %c0_32], %107 {strides = array<i32>} : memref<1x8x128xf32, #tpu.memory_space<vmem>>, vector<1x8x128xf32>,
    return
  }
  func.func @transform_0(%arg0: i32) -> (i32, i32, i32) {
    %c0_i32 = arith.constant 0 : i32
    %c0_i32_0 = arith.constant 0 : i32
    %c0_i32_1 = arith.constant 0 : i32
    return %arg0, %c0_i32, %c0_i32_0 : i32, i32, i32
  }
  func.func @transform_1(%arg0: i32) -> (i32, i32) {
    %c0_i32 = arith.constant 0 : i32
    %c0_i32_0 = arith.constant 0 : i32
    %c0_i32_1 = arith.constant 0 : i32
    return %c0_i32, %c0_i32_0 : i32, i32
  }
  func.func @transform_2(%arg0: i32) -> (i32, i32) {
    %c0_i32 = arith.constant 0 : i32
    %c0_i32_0 = arith.constant 0 : i32
    %c0_i32_1 = arith.constant 0 : i32
    return %c0_i32, %c0_i32_0 : i32, i32
  }
  func.func @transform_3(%arg0: i32) -> (i32, i32) {
    %c0_i32 = arith.constant 0 : i32
    %c0_i32_0 = arith.constant 0 : i32
    %c0_i32_1 = arith.constant 0 : i32
    return %c0_i32, %c0_i32_0 : i32, i32
  }
  func.func @transform_4(%arg0: i32) -> (i32, i32) {
    %c0_i32 = arith.constant 0 : i32
    %c0_i32_0 = arith.constant 0 : i32
    %c0_i32_1 = arith.constant 0 : i32
    return %c0_i32, %c0_i32_0 : i32, i32
  }
  func.func @transform_5(%arg0: i32) -> (i32, i32) {
    %c0_i32 = arith.constant 0 : i32
    %c0_i32_0 = arith.constant 0 : i32
    %c0_i32_1 = arith.constant 0 : i32
    return %c0_i32, %c0_i32_0 : i32, i32
  }
  func.func @transform_6(%arg0: i32) -> (i32, i32) {
    %c0_i32 = arith.constant 0 : i32
    %c0_i32_0 = arith.constant 0 : i32
    %c0_i32_1 = arith.constant 0 : i32
    return %c0_i32, %c0_i32_0 : i32, i32
  }
  func.func @transform_7(%arg0: i32) -> (i32, i32) {
    %c0_i32 = arith.constant 0 : i32
    %c0_i32_0 = arith.constant 0 : i32
    %c0_i32_1 = arith.constant 0 : i32
    return %c0_i32, %c0_i32_0 : i32, i32
  }
  func.func @transform_8(%arg0: i32) -> (i32, i32, i32) {
    %c0_i32 = arith.constant 0 : i32
    %c0_i32_0 = arith.constant 0 : i32
    %c0_i32_1 = arith.constant 0 : i32
    return %arg0, %c0_i32, %c0_i32_0 : i32, i32, i32
  }
}

</mosaic_0001>

<llo_original>
// kernel: multi_scale_block.1
$region0: #{multi_scale_block.1}
  #allocation0 [shape = 'u32[]', space=smem, size = 0x4, offset = 0x4, fixed_abs, tag = 'smem constant byte address 0x4 - core index']
  #allocation1 [shape = 'u32[72,128]{1,0:T(1,128)}', space=vmem, size = 0x9000, scoped, tag = 'internal scratch']
  %s0 = inlined_call_operand.vmem [shape: f32[2,8,150], index: 0, kind: input, shape index: {}]
  %s1 = inlined_call_operand.vmem [shape: bf16[32,120], index: 1, kind: input, shape index: {}]
  %s2 = inlined_call_operand.vmem [shape: f32[32,1], index: 2, kind: input, shape index: {}]
  %s3 = inlined_call_operand.vmem [shape: bf16[32,288], index: 3, kind: input, shape index: {}]
  %s4 = inlined_call_operand.vmem [shape: bf16[8,32], index: 4, kind: input, shape index: {}]
  %s5 = inlined_call_operand.vmem [shape: f32[8,1], index: 5, kind: input, shape index: {}]
  %s6 = inlined_call_operand.vmem [shape: bf16[8,8], index: 6, kind: input, shape index: {}]
  %s7 = inlined_call_operand.vmem [shape: f32[8,1], index: 7, kind: input, shape index: {}]
  %s8 = inlined_call_operand.hbm [shape: f32[2,8,128], index: 8, kind: output, shape index: {}]
  %s9 = sld [smem:[#allocation0]]
  $region65: #{multi_scale_block.1} parent=0
    _
  %s11 = ssub.s32 1, %s9
  %s12 = scalar_select 0, %s11, %s9
  $region1: #{multi_scale_block.1} parent=0
    #allocation2 [shape = 'u8[8192]{0}', space=vmem, size = 0x2000, scoped, tag = 'output window, operand 0']
    #allocation3 [shape = 's32[2]{0}', space=sflag, size = 0x8, scoped, tag = 'scoped memory for multi_scale_block.1']
    %13 = vsyncpa [#allocation3], 0
    %s14 = scalar_lea.sflag [#allocation3], 1
    %15 = vsyncpa %s14, 0
    loop: start=0, step=1, limit=4
    $region2: #{multi_scale_block.1} parent=1 // loop_pre_header
      _
    $region3: #{multi_scale_block.1} parent=1 // loop_header
      %s17 = sphi 0, %s21
      %p18 = scmp.ge.s32.totalorder %s17, 4
      %s27 = sphi 0, %s29
      %s30 = sphi 0, %s27
      %s31 = sphi 0, %s30
      %s47 = sphi 0, %s31
      %s51 = sphi 0, %s51
      %s53 = sphi 0, %s51
      %s54 = sphi 0, %s53
      %s68 = sphi 0, %s54
      %s72 = sphi 0, %s72
      %s74 = sphi 0, %s72
      %s75 = sphi 0, %s74
      %s89 = sphi 0, %s75
      %s93 = sphi 0, %s93
      %s95 = sphi 0, %s93
      %s96 = sphi 0, %s95
      %s110 = sphi 0, %s96
      %s114 = sphi 0, %s114
      %s116 = sphi 0, %s114
      %s117 = sphi 0, %s116
      %s131 = sphi 0, %s117
      %s135 = sphi 0, %s135
      %s137 = sphi 0, %s135
      %s138 = sphi 0, %s137
      %s152 = sphi 0, %s138
      %s156 = sphi 0, %s156
      %s158 = sphi 0, %s156
      %s159 = sphi 0, %s158
      %s173 = sphi 0, %s159
      %s177 = sphi 0, %s177
      %s179 = sphi 0, %s177
      %s180 = sphi 0, %s179
      %s194 = sphi 0, %s180
      %s200 = sphi 0, %s202
      %s203 = sphi 0, %s200
      %s204 = sphi 0, %s203
      %s220 = sphi 0, %s204
    $region4: #{multi_scale_block.1} parent=1 // loop_header_branch
      %20 = sbr.rel (%p18) target = $region8
    $region5: #{multi_scale_block.1} parent=1 // loop_body
      %s22 = ssub.s32 %s17, 1
      %s23 = ssub.s32 %s17, 2
      %s24 = sadd.s32 %s17, 1
      %s25 = ssub.s32 %s17, %s24
      %p26 = scmp.eq.s32.totalorder %s25, 0
      %s28 = sadd.s32 %s27, 1
      %s29 = scalar_select %p26, %s27, %s28
      %p32 = pneg %p26
      %p33 = scmp.eq.s32.totalorder %s17, 1
      %p34 = por %p32, %p33
      %p35 = scmp.ne.s32.totalorder %s27, %s30
      %p36 = scmp.eq.s32.totalorder %s17, 0
      %p37 = por %p35, %p36
      %p38 = scmp.ne.s32.totalorder %s27, %s30
      %p39 = scmp.eq.s32.totalorder %s22, 1
      %p40 = por %p38, %p39
      %p41 = scmp.ne.s32.totalorder %s30, %s31
      %p42 = scmp.eq.s32.totalorder %s22, 0
      %p43 = por %p41, %p42
      %p44 = scmp.ne.s32.totalorder %s30, %s31
      %p45 = scmp.eq.s32.totalorder %s23, 1
      %p46 = por %p44, %p45
      %p48 = scmp.ne.s32.totalorder %s31, %s47
      %p49 = scmp.eq.s32.totalorder %s23, 0
      %p50 = por %p48, %p49
      %s52 = sadd.s32 %s51, 1
      %p55 = scmp.eq.s32.totalorder %s17, 1
      %p56 = scmp.ne.s32.totalorder %s51, %s53
      %p57 = scmp.eq.s32.totalorder %s17, 0
      %p58 = por %p56, %p57
      %p59 = scmp.ne.s32.totalorder %s51, %s53
      %p60 = scmp.eq.s32.totalorder %s22, 1
      %p61 = por %p59, %p60
      %p62 = scmp.ne.s32.totalorder %s53, %s54
      %p63 = scmp.eq.s32.totalorder %s22, 0
      %p64 = por %p62, %p63
      %p65 = scmp.ne.s32.totalorder %s53, %s54
      %p66 = scmp.eq.s32.totalorder %s23, 1
      %p67 = por %p65, %p66
      %p69 = scmp.ne.s32.totalorder %s54, %s68
      %p70 = scmp.eq.s32.totalorder %s23, 0
      %p71 = por %p69, %p70
      %s73 = sadd.s32 %s72, 1
      %p76 = scmp.eq.s32.totalorder %s17, 1
      %p77 = scmp.ne.s32.totalorder %s72, %s74
      %p78 = scmp.eq.s32.totalorder %s17, 0
      %p79 = por %p77, %p78
      %p80 = scmp.ne.s32.totalorder %s72, %s74
      %p81 = scmp.eq.s32.totalorder %s22, 1
      %p82 = por %p80, %p81
      %p83 = scmp.ne.s32.totalorder %s74, %s75
      %p84 = scmp.eq.s32.totalorder %s22, 0
      %p85 = por %p83, %p84
      %p86 = scmp.ne.s32.totalorder %s74, %s75
      %p87 = scmp.eq.s32.totalorder %s23, 1
      %p88 = por %p86, %p87
      %p90 = scmp.ne.s32.totalorder %s75, %s89
      %p91 = scmp.eq.s32.totalorder %s23, 0
      %p92 = por %p90, %p91
      %s94 = sadd.s32 %s93, 1
      %p97 = scmp.eq.s32.totalorder %s17, 1
      %p98 = scmp.ne.s32.totalorder %s93, %s95
      %p99 = scmp.eq.s32.totalorder %s17, 0
      %p100 = por %p98, %p99
      %p101 = scmp.ne.s32.totalorder %s93, %s95
      %p102 = scmp.eq.s32.totalorder %s22, 1
      %p103 = por %p101, %p102
      %p104 = scmp.ne.s32.totalorder %s95, %s96
      %p105 = scmp.eq.s32.totalorder %s22, 0
      %p106 = por %p104, %p105
      %p107 = scmp.ne.s32.totalorder %s95, %s96
      %p108 = scmp.eq.s32.totalorder %s23, 1
      %p109 = por %p107, %p108
      %p111 = scmp.ne.s32.totalorder %s96, %s110
      %p112 = scmp.eq.s32.totalorder %s23, 0
      %p113 = por %p111, %p112
      %s115 = sadd.s32 %s114, 1
      %p118 = scmp.eq.s32.totalorder %s17, 1
      %p119 = scmp.ne.s32.totalorder %s114, %s116
      %p120 = scmp.eq.s32.totalorder %s17, 0
      %p121 = por %p119, %p120
      %p122 = scmp.ne.s32.totalorder %s114, %s116
      %p123 = scmp.eq.s32.totalorder %s22, 1
      %p124 = por %p122, %p123
      %p125 = scmp.ne.s32.totalorder %s116, %s117
      %p126 = scmp.eq.s32.totalorder %s22, 0
      %p127 = por %p125, %p126
      %p128 = scmp.ne.s32.totalorder %s116, %s117
      %p129 = scmp.eq.s32.totalorder %s23, 1
      %p130 = por %p128, %p129
      %p132 = scmp.ne.s32.totalorder %s117, %s131
      %p133 = scmp.eq.s32.totalorder %s23, 0
      %p134 = por %p132, %p133
      %s136 = sadd.s32 %s135, 1
      %p139 = scmp.eq.s32.totalorder %s17, 1
      %p140 = scmp.ne.s32.totalorder %s135, %s137
      %p141 = scmp.eq.s32.totalorder %s17, 0
      %p142 = por %p140, %p141
      %p143 = scmp.ne.s32.totalorder %s135, %s137
      %p144 = scmp.eq.s32.totalorder %s22, 1
      %p145 = por %p143, %p144
      %p146 = scmp.ne.s32.totalorder %s137, %s138
      %p147 = scmp.eq.s32.totalorder %s22, 0
      %p148 = por %p146, %p147
      %p149 = scmp.ne.s32.totalorder %s137, %s138
      %p150 = scmp.eq.s32.totalorder %s23, 1
      %p151 = por %p149, %p150
      %p153 = scmp.ne.s32.totalorder %s138, %s152
      %p154 = scmp.eq.s32.totalorder %s23, 0
      %p155 = por %p153, %p154
      %s157 = sadd.s32 %s156, 1
      %p160 = scmp.eq.s32.totalorder %s17, 1
      %p161 = scmp.ne.s32.totalorder %s156, %s158
      %p162 = scmp.eq.s32.totalorder %s17, 0
      %p163 = por %p161, %p162
      %p164 = scmp.ne.s32.totalorder %s156, %s158
      %p165 = scmp.eq.s32.totalorder %s22, 1
      %p166 = por %p164, %p165
      %p167 = scmp.ne.s32.totalorder %s158, %s159
      %p168 = scmp.eq.s32.totalorder %s22, 0
      %p169 = por %p167, %p168
      %p170 = scmp.ne.s32.totalorder %s158, %s159
      %p171 = scmp.eq.s32.totalorder %s23, 1
      %p172 = por %p170, %p171
      %p174 = scmp.ne.s32.totalorder %s159, %s173
      %p175 = scmp.eq.s32.totalorder %s23, 0
      %p176 = por %p174, %p175
      %s178 = sadd.s32 %s177, 1
      %p181 = scmp.eq.s32.totalorder %s17, 1
      %p182 = scmp.ne.s32.totalorder %s177, %s179
      %p183 = scmp.eq.s32.totalorder %s17, 0
      %p184 = por %p182, %p183
      %p185 = scmp.ne.s32.totalorder %s177, %s179
      %p186 = scmp.eq.s32.totalorder %s22, 1
      %p187 = por %p185, %p186
      %p188 = scmp.ne.s32.totalorder %s179, %s180
      %p189 = scmp.eq.s32.totalorder %s22, 0
      %p190 = por %p188, %p189
      %p191 = scmp.ne.s32.totalorder %s179, %s180
      %p192 = scmp.eq.s32.totalorder %s23, 1
      %p193 = por %p191, %p192
      %p195 = scmp.ne.s32.totalorder %s180, %s194
      %p196 = scmp.eq.s32.totalorder %s23, 0
      %p197 = por %p195, %p196
      %s198 = ssub.s32 %s17, %s24
      %p199 = scmp.eq.s32.totalorder %s198, 0
      %s201 = sadd.s32 %s200, 1
      %s202 = scalar_select %p199, %s200, %s201
      %p205 = pneg %p199
      %p206 = scmp.eq.s32.totalorder %s17, 1
      %p207 = por %p205, %p206
      %p208 = scmp.ne.s32.totalorder %s200, %s203
      %p209 = scmp.eq.s32.totalorder %s17, 0
      %p210 = por %p208, %p209
      %p211 = scmp.ne.s32.totalorder %s200, %s203
      %p212 = scmp.eq.s32.totalorder %s22, 1
      %p213 = por %p211, %p212
      %p214 = scmp.ne.s32.totalorder %s203, %s204
      %p215 = scmp.eq.s32.totalorder %s22, 0
      %p216 = por %p214, %p215
      %p217 = scmp.ne.s32.totalorder %s203, %s204
      %p218 = scmp.eq.s32.totalorder %s23, 1
      %p219 = por %p217, %p218
      %p221 = scmp.ne.s32.totalorder %s204, %s220
      %p222 = scmp.eq.s32.totalorder %s23, 0
      %p223 = por %p221, %p222
      %p224 = scmp.le.s32.totalorder 1, %s17
      %p225 = scmp.lt.s32.totalorder %s17, 3
      %p226 = pnand %p224, %p225
      %p227 = pneg %p226
      // Predicated region
      $region9: #{multi_scale_block.1} parent=5 // pred_check
        _
      $region10: #{multi_scale_block.1} parent=5 // pred_check_branch
        %229 = sbr.rel (%p226) target = $region12
      $region11: #{multi_scale_block.1} parent=5 // pred_region
        %s230 = ssub.s32 %s17, 1
        // Predicated region
        $region13: #{multi_scale_block.1} parent=11 // pred_check
          %p231 = pneg %p64
        $region14: #{multi_scale_block.1} parent=11 // pred_check_branch
          %233 = sbr.rel (%p231) target = $region16
        $region15: #{multi_scale_block.1} parent=11 // pred_region
          _
        $region16: #{multi_scale_block.1} parent=11 // pred_fallthru
          _
        // Predicated region
        $region17: #{multi_scale_block.1} parent=11 // pred_check
          %p234 = pneg %p85
        $region18: #{multi_scale_block.1} parent=11 // pred_check_branch
          %236 = sbr.rel (%p234) target = $region20
        $region19: #{multi_scale_block.1} parent=11 // pred_region
          _
        $region20: #{multi_scale_block.1} parent=11 // pred_fallthru
          _
        // Predicated region
        $region21: #{multi_scale_block.1} parent=11 // pred_check
          %p237 = pneg %p106
        $region22: #{multi_scale_block.1} parent=11 // pred_check_branch
          %239 = sbr.rel (%p237) target = $region24
        $region23: #{multi_scale_block.1} parent=11 // pred_region
          _
        $region24: #{multi_scale_block.1} parent=11 // pred_fallthru
          _
        // Predicated region
        $region25: #{multi_scale_block.1} parent=11 // pred_check
          %p240 = pneg %p127
        $region26: #{multi_scale_block.1} parent=11 // pred_check_branch
          %242 = sbr.rel (%p240) target = $region28
        $region27: #{multi_scale_block.1} parent=11 // pred_region
          _
        $region28: #{multi_scale_block.1} parent=11 // pred_fallthru
          _
        // Predicated region
        $region29: #{multi_scale_block.1} parent=11 // pred_check
          %p243 = pneg %p148
        $region30: #{multi_scale_block.1} parent=11 // pred_check_branch
          %245 = sbr.rel (%p243) target = $region32
        $region31: #{multi_scale_block.1} parent=11 // pred_region
          _
        $region32: #{multi_scale_block.1} parent=11 // pred_fallthru
          _
        // Predicated region
        $region33: #{multi_scale_block.1} parent=11 // pred_check
          %p246 = pneg %p169
        $region34: #{multi_scale_block.1} parent=11 // pred_check_branch
          %248 = sbr.rel (%p246) target = $region36
        $region35: #{multi_scale_block.1} parent=11 // pred_region
          _
        $region36: #{multi_scale_block.1} parent=11 // pred_fallthru
          _
        // Predicated region
        $region37: #{multi_scale_block.1} parent=11 // pred_check
          %p249 = pneg %p190
        $region38: #{multi_scale_block.1} parent=11 // pred_check_branch
          %251 = sbr.rel (%p249) target = $region40
        $region39: #{multi_scale_block.1} parent=11 // pred_region
          _
        $region40: #{multi_scale_block.1} parent=11 // pred_fallthru
          _
      $region12: #{multi_scale_block.1} parent=5 // pred_fallthru
        _
      %p252 = scmp.lt.s32.totalorder %s17, 2
      // Predicated region
      $region41: #{multi_scale_block.1} parent=5 // pred_check
        %p253 = pneg %p252
      $region42: #{multi_scale_block.1} parent=5 // pred_check_branch
        %255 = sbr.rel (%p253) target = $region44
      $region43: #{multi_scale_block.1} parent=5 // pred_region
        // Predicated region
        $region45: #{multi_scale_block.1} parent=43 // pred_check
          %p256 = pneg %p37
        $region46: #{multi_scale_block.1} parent=43 // pred_check_branch
          %258 = sbr.rel (%p256) target = $region48
        $region47: #{multi_scale_block.1} parent=43 // pred_region
          %p259 = scmp.lt.s32.totalorder %s17, 1
          %s260 = scalar_select %p259, %s17, 1
          %s261 = smul.addr %s260, 2
          %s262 = smul.addr %s261, 8
          %s263 = scalar_lea.vmem %s0, %s262
        $region48: #{multi_scale_block.1} parent=43 // pred_fallthru
          _
      $region44: #{multi_scale_block.1} parent=5 // pred_fallthru
        _
      %p264 = scmp.le.s32.totalorder 1, %s17
      %p265 = scmp.lt.s32.totalorder %s17, 3
      %p266 = pnand %p264, %p265
      %p267 = pneg %p266
      // Predicated region
      $region49: #{multi_scale_block.1} parent=5 // pred_check
        _
      $region50: #{multi_scale_block.1} parent=5 // pred_check_branch
        %269 = sbr.rel (%p266) target = $region52
      $region51: #{multi_scale_block.1} parent=5 // pred_region
        %s270 = ssub.s32 %s17, 1
        %p271 = scmp.lt.s32.totalorder %s22, 1
        %s272 = scalar_select %p271, %s22, 1
        %s273 = smul.addr %s272, 2
        %s274 = smul.addr %s273, 8
        %s275 = scalar_lea.vmem %s0, %s274
        %p276 = pneg %p43
        %p277 = pneg %p40
        %p278 = pneg %p64
        %p279 = pneg %p61
        %p280 = pneg %p85
        %p281 = pneg %p82
        %p282 = pneg %p106
        %p283 = pneg %p103
        %p284 = pneg %p127
        %p285 = pneg %p124
        %p286 = pneg %p148
        %p287 = pneg %p145
        %p288 = pneg %p169
        %p289 = pneg %p166
        %p290 = pneg %p190
        %p291 = pneg %p187
        %p292 = pneg %p216
        %p293 = pneg %p213
        %s294 = sand.u32 %s203, 1
        %s295 = scalar_lea.sflag [#allocation3], %s294
        %s296 = sand.u32 %s203, 1
        %s297 = smul.addr %s296, 8
        %s298 = scalar_lea.vmem [#allocation2], %s297
        %p299 = scmp.lt.s32.totalorder %s22, 1
        %s300 = scalar_select %p299, %s22, 1
        %s301 = smul.addr %s300, 2
        %s302 = smul.addr %s301, 8
        %s303 = scalar_lea.vmem %s0, %s302
        %v305 = vld [vmem:[%s303] sm:$0xff]
        %v306 = vld [vmem:[%s303 + $0x8] sm:$0xff]
        %v307 = vlaneseq
        %v308 = vand.u32 %v307, 127
        %v309 = vadd.s32 %v308, 128
        %vm310 = vcmp.ge.s32.totalorder %v308, 4
        %vm311 = vcmp.ge.s32.totalorder %v309, 4
        %vm312 = vcmp.lt.s32.totalorder %v308, 20
        %vm313 = vcmp.lt.s32.totalorder %v309, 20
        %vm314 = vmand %vm310, %vm312
        %vm315 = vmand %vm311, %vm313
        %v316 = vsel %vm314, 1, 0
        %v317 = vsel %vm315, 1, 0
        %v318 = vcvt.s32.f32 %v316
        %v319 = vcvt.s32.f32 %v317
        %vm320 = vcmp.lt.s32.totalorder %v308, 16
        %v321 = vsel %vm320, 1, 0
        %v322 = vcvt.s32.f32 %v321
        %325 = vrot.lane.b32.xlu0 %v305, 127
        %v326 = vpop.permute.xlu0 %325
        %327 = vrot.lane.b32.xlu0 %v306, 127
        %v328 = vpop.permute.xlu0 %327
        %vm329 = vcmask 1039360
        %v330 = vsel %vm329, %v326, %v328
        %333 = vrot.lane.b32.xlu0 %v305, 126
        %v334 = vpop.permute.xlu0 %333
        %335 = vrot.lane.b32.xlu0 %v306, 126
        %v336 = vpop.permute.xlu0 %335
        %vm337 = vcmask 1031168
        %v338 = vsel %vm337, %v334, %v336
        %341 = vrot.lane.b32.xlu0 %v305, 125
        %v342 = vpop.permute.xlu0 %341
        %343 = vrot.lane.b32.xlu0 %v306, 125
        %v344 = vpop.permute.xlu0 %343
        %vm345 = vcmask 1022976
        %v346 = vsel %vm345, %v342, %v344
        %349 = vrot.lane.b32.xlu0 %v305, 124
        %v350 = vpop.permute.xlu0 %349
        %351 = vrot.lane.b32.xlu0 %v306, 124
        %v352 = vpop.permute.xlu0 %351
        %vm353 = vcmask 1014784
        %v354 = vsel %vm353, %v350, %v352
        %357 = vrot.lane.b32.xlu0 %v305, 123
        %v358 = vpop.permute.xlu0 %357
        %359 = vrot.lane.b32.xlu0 %v306, 123
        %v360 = vpop.permute.xlu0 %359
        %vm361 = vcmask 1006592
        %v362 = vsel %vm361, %v358, %v360
        %365 = vrot.lane.b32.xlu0 %v305, 122
        %v366 = vpop.permute.xlu0 %365
        %367 = vrot.lane.b32.xlu0 %v306, 122
        %v368 = vpop.permute.xlu0 %367
        %vm369 = vcmask 998400
        %v370 = vsel %vm369, %v366, %v368
        %373 = vrot.lane.b32.xlu0 %v305, 121
        %v374 = vpop.permute.xlu0 %373
        %375 = vrot.lane.b32.xlu0 %v306, 121
        %v376 = vpop.permute.xlu0 %375
        %vm377 = vcmask 990208
        %v378 = vsel %vm377, %v374, %v376
        %381 = vrot.lane.b32.xlu0 %v305, 120
        %v382 = vpop.permute.xlu0 %381
        %383 = vrot.lane.b32.xlu0 %v306, 120
        %v384 = vpop.permute.xlu0 %383
        %vm385 = vcmask 982016
        %v386 = vsel %vm385, %v382, %v384
        %389 = vrot.lane.b32.xlu0 %v305, 119
        %v390 = vpop.permute.xlu0 %389
        %391 = vrot.lane.b32.xlu0 %v306, 119
        %v392 = vpop.permute.xlu0 %391
        %vm393 = vcmask 973824
        %v394 = vsel %vm393, %v390, %v392
        %397 = vrot.lane.b32.xlu0 %v305, 118
        %v398 = vpop.permute.xlu0 %397
        %399 = vrot.lane.b32.xlu0 %v306, 118
        %v400 = vpop.permute.xlu0 %399
        %vm401 = vcmask 965632
        %v402 = vsel %vm401, %v398, %v400
        %405 = vrot.lane.b32.xlu0 %v305, 117
        %v406 = vpop.permute.xlu0 %405
        %407 = vrot.lane.b32.xlu0 %v306, 117
        %v408 = vpop.permute.xlu0 %407
        %vm409 = vcmask 957440
        %v410 = vsel %vm409, %v406, %v408
        %413 = vrot.lane.b32.xlu0 %v305, 116
        %v414 = vpop.permute.xlu0 %413
        %415 = vrot.lane.b32.xlu0 %v306, 116
        %v416 = vpop.permute.xlu0 %415
        %vm417 = vcmask 949248
        %v418 = vsel %vm417, %v414, %v416
        %421 = vrot.lane.b32.xlu0 %v305, 115
        %v422 = vpop.permute.xlu0 %421
        %423 = vrot.lane.b32.xlu0 %v306, 115
        %v424 = vpop.permute.xlu0 %423
        %vm425 = vcmask 941056
        %v426 = vsel %vm425, %v422, %v424
        %429 = vrot.lane.b32.xlu0 %v305, 114
        %v430 = vpop.permute.xlu0 %429
        %431 = vrot.lane.b32.xlu0 %v306, 114
        %v432 = vpop.permute.xlu0 %431
        %vm433 = vcmask 932864
        %v434 = vsel %vm433, %v430, %v432
        %v437 = vld [vmem:[%s1] sm:$0xf]
        %v438 = vld [vmem:[%s1 + $0x4] sm:$0xf]
        %v439 = vld [vmem:[%s1 + $0x8] sm:$0xf]
        %v440 = vld [vmem:[%s1 + $0xc] sm:$0xf]
        %v441 = vpack.c.bf16 %v330, %v305
        %v442 = vpack.c.bf16 %v328, %v306
        %v443 = vpack.c.bf16 %v346, %v338
        %v444 = vpack.c.bf16 %v344, %v336
        %v445 = vpack.c.bf16 %v362, %v354
        %v446 = vpack.c.bf16 %v360, %v352
        %v447 = vpack.c.bf16 %v378, %v370
        %v448 = vpack.c.bf16 %v376, %v368
        %v449 = vpack.c.bf16 %v394, %v386
        %v450 = vpack.c.bf16 %v392, %v384
        %v451 = vpack.c.bf16 %v410, %v402
        %v452 = vpack.c.bf16 %v408, %v400
        %v453 = vpack.c.bf16 %v426, %v418
        %v454 = vpack.c.bf16 %v424, %v416
        %v455 = vpack.c.bf16 %v434, %v434
        %v456 = vpack.c.bf16 %v432, %v432
        %v457 = vld [vmem:[%s2] sm:$0xff]
        %v458 = vld [vmem:[%s2 + $0x8] sm:$0xff]
        %v459 = vld [vmem:[%s2 + $0x10] sm:$0xff]
        %v460 = vld [vmem:[%s2 + $0x18] sm:$0xff]
        %462 = vset.pattern.permute.xlu0 0
        %463 = vperm.xlu0 %462, %v457
        %v464 = vpop.permute.xlu0 %463
        %467 = vset.pattern.permute.xlu0 0
        %468 = vperm.xlu0 %467, %v458
        %v469 = vpop.permute.xlu0 %468
        %472 = vset.pattern.permute.xlu0 0
        %473 = vperm.xlu0 %472, %v459
        %v474 = vpop.permute.xlu0 %473
        %477 = vset.pattern.permute.xlu0 0
        %478 = vperm.xlu0 %477, %v460
        %v479 = vpop.permute.xlu0 %478
        %v485 = vunpack.c.l.b16 %v437
        %v486 = vunpack.c.l.b16 %v438
        %v487 = vunpack.c.l.b16 %v439
        %v488 = vunpack.c.l.b16 %v440
        %v489 = vpack.c.b16 %v486, %v485
        %v490 = vpack.c.b16 %v488, %v487
        %v492 = vsel %vm385, %v489, 0
        %v495 = vsel %vm385, %v490, 0
        %vm497 = vcmask 1043456
        %v499 = vsel %vm497, %v455, 0
        %v502 = vsel %vm497, %v456, 0
        %504 = vmatpush.bf16.msra.mxu0 %v499
        %505 = vmatpush.bf16.msra.mxu0 %v453
        %506 = vmatpush.bf16.msra.mxu0 %v451
        %507 = vmatpush.bf16.msra.mxu0 %v449
        %508 = vmatpush.bf16.msra.mxu0 %v447
        %509 = vmatpush.bf16.msra.mxu0 %v445
        %510 = vmatpush.bf16.msra.mxu0 %v443
        %511 = vmatpush.bf16.msra.mxu0 %v441
        %512 = vmatmul.bf16.gmra.mxu0 %v492
        %v513 = vpop.f32.mrf.mxu0
        %v514 = vadd.f32 %v464, %v513
        %v515 = vpop.f32.mrf.mxu0
        %v516 = vadd.f32 %v469, %v515
        %517 = vmatmul.bf16.gmra.mxu0 %v495
        %v518 = vpop.f32.mrf.mxu0
        %v519 = vadd.f32 %v474, %v518
        %v520 = vpop.f32.mrf.mxu0
        %v521 = vadd.f32 %v479, %v520
        %522 = vdwg.mxu0
        %523 = vmatpush.bf16.msra.mxu0 %v502
        %524 = vmatpush.bf16.msra.mxu0 %v454
        %525 = vmatpush.bf16.msra.mxu0 %v452
        %526 = vmatpush.bf16.msra.mxu0 %v450
        %527 = vmatpush.bf16.msra.mxu0 %v448
        %528 = vmatpush.bf16.msra.mxu0 %v446
        %529 = vmatpush.bf16.msra.mxu0 %v444
        %530 = vmatpush.bf16.msra.mxu0 %v442
        %531 = vmatmul.bf16.gmra.mxu0 %v492
        %v532 = vpop.f32.mrf.mxu0
        %v533 = vadd.f32 %v464, %v532
        %v534 = vpop.f32.mrf.mxu0
        %v535 = vadd.f32 %v469, %v534
        %536 = vmatmul.bf16.gmra.mxu0 %v495
        %v537 = vpop.f32.mrf.mxu0
        %v538 = vadd.f32 %v474, %v537
        %v539 = vpop.f32.mrf.mxu0
        %v540 = vadd.f32 %v479, %v539
        %541 = vdwg.mxu0
        %v542 = vmul.f32 %v514, %v318
        %v543 = vmul.f32 %v533, %v319
        %v544 = vmul.f32 %v516, %v318
        %v545 = vmul.f32 %v535, %v319
        %v546 = vmul.f32 %v519, %v318
        %v547 = vmul.f32 %v538, %v319
        %v548 = vmul.f32 %v521, %v318
        %v549 = vmul.f32 %v540, %v319
        %v550 = vpack.c.bf16 %v543, %v542
        %v551 = vpack.c.bf16 %v545, %v544
        %v552 = vpack.c.bf16 %v547, %v546
        %v553 = vpack.c.bf16 %v549, %v548
        %v558 = vunpack.c.l.b16 %v550
        %v559 = vunpack.c.l.b16 %v551
        %v560 = vunpack.c.l.b16 %v552
        %v561 = vunpack.c.l.b16 %v553
        %v562 = vpack.c.b16 %v559, %v558
        %v563 = vpack.c.b16 %v561, %v560
        %v566 = vunpack.c.h.b16 %v550
        %v567 = vunpack.c.h.b16 %v551
        %v568 = vunpack.c.h.b16 %v552
        %v569 = vunpack.c.h.b16 %v553
        %v570 = vpack.c.b16 %v567, %v566
        %v571 = vpack.c.b16 %v569, %v568
        %572 = vrot.lane.b32.xlu0 %v562, 127
        %v573 = vpop.permute.xlu0 %572
        %574 = vrot.lane.b32.xlu0 %v570, 127
        %v575 = vpop.permute.xlu0 %574
        %576 = vrot.lane.b32.xlu0 %v563, 127
        %v577 = vpop.permute.xlu0 %576
        %578 = vrot.lane.b32.xlu0 %v571, 127
        %v579 = vpop.permute.xlu0 %578
        %vm580 = vcmask 1039360
        %v581 = vsel %vm580, %v573, %v575
        %v582 = vsel %vm580, %v577, %v579
        %585 = vrot.lane.b32.xlu0 %v562, 126
        %v586 = vpop.permute.xlu0 %585
        %587 = vrot.lane.b32.xlu0 %v570, 126
        %v588 = vpop.permute.xlu0 %587
        %589 = vrot.lane.b32.xlu0 %v563, 126
        %v590 = vpop.permute.xlu0 %589
        %591 = vrot.lane.b32.xlu0 %v571, 126
        %v592 = vpop.permute.xlu0 %591
        %vm593 = vcmask 1031168
        %v594 = vsel %vm593, %v586, %v588
        %v595 = vsel %vm593, %v590, %v592
        %598 = vrot.lane.b32.xlu0 %v562, 125
        %v599 = vpop.permute.xlu0 %598
        %600 = vrot.lane.b32.xlu0 %v570, 125
        %v601 = vpop.permute.xlu0 %600
        %602 = vrot.lane.b32.xlu0 %v563, 125
        %v603 = vpop.permute.xlu0 %602
        %604 = vrot.lane.b32.xlu0 %v571, 125
        %v605 = vpop.permute.xlu0 %604
        %vm606 = vcmask 1022976
        %v607 = vsel %vm606, %v599, %v601
        %v608 = vsel %vm606, %v603, %v605
        %611 = vrot.lane.b32.xlu0 %v562, 124
        %v612 = vpop.permute.xlu0 %611
        %613 = vrot.lane.b32.xlu0 %v570, 124
        %v614 = vpop.permute.xlu0 %613
        %615 = vrot.lane.b32.xlu0 %v563, 124
        %v616 = vpop.permute.xlu0 %615
        %617 = vrot.lane.b32.xlu0 %v571, 124
        %v618 = vpop.permute.xlu0 %617
        %vm619 = vcmask 1014784
        %v620 = vsel %vm619, %v612, %v614
        %v621 = vsel %vm619, %v616, %v618
        %624 = vrot.lane.b32.xlu0 %v562, 123
        %v625 = vpop.permute.xlu0 %624
        %626 = vrot.lane.b32.xlu0 %v570, 123
        %v627 = vpop.permute.xlu0 %626
        %628 = vrot.lane.b32.xlu0 %v563, 123
        %v629 = vpop.permute.xlu0 %628
        %630 = vrot.lane.b32.xlu0 %v571, 123
        %v631 = vpop.permute.xlu0 %630
        %vm632 = vcmask 1006592
        %v633 = vsel %vm632, %v625, %v627
        %v634 = vsel %vm632, %v629, %v631
        %637 = vrot.lane.b32.xlu0 %v562, 122
        %v638 = vpop.permute.xlu0 %637
        %639 = vrot.lane.b32.xlu0 %v570, 122
        %v640 = vpop.permute.xlu0 %639
        %641 = vrot.lane.b32.xlu0 %v563, 122
        %v642 = vpop.permute.xlu0 %641
        %643 = vrot.lane.b32.xlu0 %v571, 122
        %v644 = vpop.permute.xlu0 %643
        %vm645 = vcmask 998400
        %v646 = vsel %vm645, %v638, %v640
        %v647 = vsel %vm645, %v642, %v644
        %650 = vrot.lane.b32.xlu0 %v562, 121
        %v651 = vpop.permute.xlu0 %650
        %652 = vrot.lane.b32.xlu0 %v570, 121
        %v653 = vpop.permute.xlu0 %652
        %654 = vrot.lane.b32.xlu0 %v563, 121
        %v655 = vpop.permute.xlu0 %654
        %656 = vrot.lane.b32.xlu0 %v571, 121
        %v657 = vpop.permute.xlu0 %656
        %vm658 = vcmask 990208
        %v659 = vsel %vm658, %v651, %v653
        %v660 = vsel %vm658, %v655, %v657
        %663 = vrot.lane.b32.xlu0 %v562, 120
        %v664 = vpop.permute.xlu0 %663
        %665 = vrot.lane.b32.xlu0 %v570, 120
        %v666 = vpop.permute.xlu0 %665
        %667 = vrot.lane.b32.xlu0 %v563, 120
        %v668 = vpop.permute.xlu0 %667
        %669 = vrot.lane.b32.xlu0 %v571, 120
        %v670 = vpop.permute.xlu0 %669
        %vm671 = vcmask 982016
        %v672 = vsel %vm671, %v664, %v666
        %v673 = vsel %vm671, %v668, %v670
        %v676 = vld [vmem:[%s3] sm:$0xff]
        %v677 = vld [vmem:[%s3 + $0x8] sm:$0xf]
        %v678 = vld [vmem:[%s3 + $0xc] sm:$0xff]
        %v679 = vld [vmem:[%s3 + $0x14] sm:$0xf]
        %v680 = vld [vmem:[%s3 + $0x18] sm:$0xff]
        %v681 = vld [vmem:[%s3 + $0x20] sm:$0xf]
        %v682 = vld [vmem:[%s3 + $0x24] sm:$0xff]
        %v683 = vld [vmem:[%s3 + $0x2c] sm:$0xf]
        %v692 = vunpack.c.l.b16 %v676
        %v693 = vunpack.c.h.b16 %v676
        %v694 = vunpack.c.l.b16 %v677
        %v695 = vunpack.c.l.b16 %v678
        %v696 = vunpack.c.h.b16 %v678
        %v697 = vunpack.c.l.b16 %v679
        %v698 = vunpack.c.l.b16 %v680
        %v699 = vunpack.c.h.b16 %v680
        %v700 = vunpack.c.l.b16 %v681
        %v701 = vunpack.c.l.b16 %v682
        %v702 = vunpack.c.h.b16 %v682
        %v703 = vunpack.c.l.b16 %v683
        %v704 = vpack.c.b16 %v695, %v692
        %v705 = vpack.c.b16 %v696, %v693
        %v706 = vpack.c.b16 %v697, %v694
        %v707 = vpack.c.b16 %v701, %v698
        %v708 = vpack.c.b16 %v702, %v699
        %v709 = vpack.c.b16 %v703, %v700
        %vm714 = vcmask 261120
        %v716 = vsel %vm714, %v706, 0
        %v719 = vsel %vm714, %v709, 0
        %721 = vmatpush.bf16.msra.mxu0 %v608
        %722 = vmatpush.bf16.msra.mxu0 %v607
        %723 = vmatpush.bf16.msra.mxu0 %v595
        %724 = vmatpush.bf16.msra.mxu0 %v594
        %725 = vmatpush.bf16.msra.mxu0 %v582
        %726 = vmatpush.bf16.msra.mxu0 %v581
        %727 = vmatpush.bf16.msra.mxu0 %v563
        %728 = vmatpush.bf16.msra.mxu0 %v562
        %729 = vmatmul.bf16.gmra.mxu0 %v704
        %v730 = vpop.f32.mrf.mxu0
        %v731 = vadd.f32 0.0, %v730
        %v732 = vpop.f32.mrf.mxu0
        %v733 = vadd.f32 0.0, %v732
        %734 = vmatmul.bf16.gmra.mxu0 %v707
        %v735 = vpop.f32.mrf.mxu0
        %v736 = vadd.f32 0.0, %v735
        %v737 = vpop.f32.mrf.mxu0
        %v738 = vadd.f32 0.0, %v737
        %739 = vdwg.mxu0
        %740 = vmatpush.bf16.msra.mxu0 %v660
        %741 = vmatpush.bf16.msra.mxu0 %v659
        %742 = vmatpush.bf16.msra.mxu0 %v647
        %743 = vmatpush.bf16.msra.mxu0 %v646
        %744 = vmatpush.bf16.msra.mxu0 %v634
        %745 = vmatpush.bf16.msra.mxu0 %v633
        %746 = vmatpush.bf16.msra.mxu0 %v621
        %747 = vmatpush.bf16.msra.mxu0 %v620
        %748 = vmatmul.bf16.gmra.mxu0 %v705
        %v749 = vpop.f32.mrf.mxu0
        %v750 = vadd.f32 %v731, %v749
        %v751 = vpop.f32.mrf.mxu0
        %v752 = vadd.f32 %v733, %v751
        %753 = vmatmul.bf16.gmra.mxu0 %v708
        %v754 = vpop.f32.mrf.mxu0
        %v755 = vadd.f32 %v736, %v754
        %v756 = vpop.f32.mrf.mxu0
        %v757 = vadd.f32 %v738, %v756
        %758 = vdwg.mxu0
        %759 = vmatpush.bf16.msra.mxu0 0
        %760 = vmatpush.bf16.msra.mxu0 0
        %761 = vmatpush.bf16.msra.mxu0 0
        %762 = vmatpush.bf16.msra.mxu0 0
        %763 = vmatpush.bf16.msra.mxu0 0
        %764 = vmatpush.bf16.msra.mxu0 0
        %765 = vmatpush.bf16.msra.mxu0 %v673
        %766 = vmatpush.bf16.msra.mxu0 %v672
        %767 = vmatmul.bf16.gmra.mxu0 %v716
        %v768 = vpop.f32.mrf.mxu0
        %v769 = vadd.f32 %v750, %v768
        %v770 = vpop.f32.mrf.mxu0
        %v771 = vadd.f32 %v752, %v770
        %772 = vmatmul.bf16.gmra.mxu0 %v719
        %v773 = vpop.f32.mrf.mxu0
        %v774 = vadd.f32 %v755, %v773
        %v775 = vpop.f32.mrf.mxu0
        %v776 = vadd.f32 %v757, %v775
        %777 = vdwg.mxu0
        %v778 = vmul.f32 %v769, %v322
        %v779 = vmul.f32 %v771, %v322
        %v780 = vmul.f32 %v774, %v322
        %v781 = vmul.f32 %v776, %v322
        %782 = vadd.xlane.f32.xlu0 %v778
        %v783 = vpop.xlane.xlu0 %782
        %784 = vadd.xlane.f32.xlu0 %v779
        %v785 = vpop.xlane.xlu0 %784
        %v786 = vmul.f32 %v783, 0.0625
        %v787 = vmul.f32 %v785, 0.0625
        %v788 = vmul.f32 %v778, %v778
        %v789 = vmul.f32 %v779, %v779
        %790 = vadd.xlane.f32.xlu0 %v788
        %v791 = vpop.xlane.xlu0 %790
        %792 = vadd.xlane.f32.xlu0 %v789
        %v793 = vpop.xlane.xlu0 %792
        %v794 = vmul.f32 %v791, 0.0625
        %v795 = vmul.f32 %v793, 0.0625
        %v796 = vmul.f32 %v786, %v786
        %v797 = vmul.f32 %v787, %v787
        %v798 = vsub.f32 %v794, %v796
        %v799 = vsub.f32 %v795, %v797
        %v800 = vsub.f32 %v778, %v786
        %v801 = vsub.f32 %v779, %v787
        %v802 = vadd.f32 %v798, 1e-05
        %v803 = vadd.f32 %v799, 1e-05
        %v804 = vrsqrt.pop %v802
        %v805 = vmul.f32 %v804, %v802
        %v806 = vmul.f32 %v805, %v804
        %v807 = vmul.f32 0.5, %v806
        %v808 = vsub.f32 1.5, %v807
        %v809 = vmul.f32 %v804, %v808
        %vm810 = vweird.f32 %v802
        %vm811 = vweird.f32 %v804
        %vm812 = vmor %vm810, %vm811
        %v813 = vsel %vm812, %v804, %v809
        %v814 = vrsqrt.pop %v803
        %v815 = vmul.f32 %v814, %v803
        %v816 = vmul.f32 %v815, %v814
        %v817 = vmul.f32 0.5, %v816
        %v818 = vsub.f32 1.5, %v817
        %v819 = vmul.f32 %v814, %v818
        %vm820 = vweird.f32 %v803
        %vm821 = vweird.f32 %v814
        %vm822 = vmor %vm820, %vm821
        %v823 = vsel %vm822, %v814, %v819
        %v824 = vmul.f32 %v800, %v813
        %v825 = vmul.f32 %v801, %v823
        %v826 = vmul.f32 %v824, 0.5
        %v827 = vmul.f32 %v825, 0.5
        %v828 = vmul.f32 %v780, 0.5
        %v829 = vmul.f32 %v781, 0.5
        %v830 = vmul.f32 %v824, 0.70710677
        %v831 = vmul.f32 %v825, 0.70710677
        %v832 = vmul.f32 %v780, 0.70710677
        %v833 = vmul.f32 %v781, 0.70710677
        %v834 = vmul.f32 %v830, %v830
        %v835 = vmin.f32 16.0, %v834
        %v836 = vmul.f32 %v835, 2.1237322e-06
        %v837 = vadd.f32 %v836, 0.00028619796
        %v838 = vmul.f32 %v835, %v837
        %v839 = vadd.f32 %v838, 0.0036580483
        %v840 = vmul.f32 %v835, %v839
        %v841 = vadd.f32 %v840, 0.05243302
        %v842 = vmul.f32 %v835, %v841
        %v843 = vadd.f32 %v842, 0.18741608
        %v844 = vmul.f32 %v835, %v843
        %v845 = vadd.f32 %v844, 1.1283791
        %v846 = vmul.f32 %v830, %v845
        %v847 = vmul.f32 %v835, 3.8918573e-05
        %v848 = vadd.f32 %v847, 0.001143296
        %v849 = vmul.f32 %v835, %v848
        %v850 = vadd.f32 %v849, 0.014752088
        %v851 = vmul.f32 %v835, %v850
        %v852 = vadd.f32 %v851, 0.112945676
        %v853 = vmul.f32 %v835, %v852
        %v854 = vadd.f32 %v853, 0.4994258
        %v855 = vmul.f32 %v835, %v854
        %v856 = vadd.f32 %v855, 1.0
        %v857 = vrcp.pop %v856
        %v858 = vmul.f32 %v856, %v857
        %v859 = vsub.f32 1.0, %v858
        %v860 = vmul.f32 %v857, %v859
        %v861 = vadd.f32 %v857, %v860
        %vm862 = vweird.f32 %v856
        %vm863 = vweird.f32 %v857
        %vm864 = vmor %vm862, %vm863
        %v865 = vsel %vm864, %v857, %v861
        %v866 = vand.u32 2147483647, %v856
        %vm867 = vcmp.eq.f32.partialorder %v866, 8.507059e+37
        %v868 = vand.u32 %v856, 2147483648
        %v869 = vor.u32 1.1754944e-38, %v868
        %v870 = vsel %vm867, %v869, %v865
        %v871 = vmul.f32 %v846, %v870
        %v872 = vmin.f32 %v871, 1.0
        %v873 = vmax.f32 %v872, -1.0
        %v874 = vmul.f32 %v831, %v831
        %v875 = vmin.f32 16.0, %v874
        %v876 = vmul.f32 %v875, 2.1237322e-06
        %v877 = vadd.f32 %v876, 0.00028619796
        %v878 = vmul.f32 %v875, %v877
        %v879 = vadd.f32 %v878, 0.0036580483
        %v880 = vmul.f32 %v875, %v879
        %v881 = vadd.f32 %v880, 0.05243302
        %v882 = vmul.f32 %v875, %v881
        %v883 = vadd.f32 %v882, 0.18741608
        %v884 = vmul.f32 %v875, %v883
        %v885 = vadd.f32 %v884, 1.1283791
        %v886 = vmul.f32 %v831, %v885
        %v887 = vmul.f32 %v875, 3.8918573e-05
        %v888 = vadd.f32 %v887, 0.001143296
        %v889 = vmul.f32 %v875, %v888
        %v890 = vadd.f32 %v889, 0.014752088
        %v891 = vmul.f32 %v875, %v890
        %v892 = vadd.f32 %v891, 0.112945676
        %v893 = vmul.f32 %v875, %v892
        %v894 = vadd.f32 %v893, 0.4994258
        %v895 = vmul.f32 %v875, %v894
        %v896 = vadd.f32 %v895, 1.0
        %v897 = vrcp.pop %v896
        %v898 = vmul.f32 %v896, %v897
        %v899 = vsub.f32 1.0, %v898
        %v900 = vmul.f32 %v897, %v899
        %v901 = vadd.f32 %v897, %v900
        %vm902 = vweird.f32 %v896
        %vm903 = vweird.f32 %v897
        %vm904 = vmor %vm902, %vm903
        %v905 = vsel %vm904, %v897, %v901
        %v906 = vand.u32 2147483647, %v896
        %vm907 = vcmp.eq.f32.partialorder %v906, 8.507059e+37
        %v908 = vand.u32 %v896, 2147483648
        %v909 = vor.u32 1.1754944e-38, %v908
        %v910 = vsel %vm907, %v909, %v905
        %v911 = vmul.f32 %v886, %v910
        %v912 = vmin.f32 %v911, 1.0
        %v913 = vmax.f32 %v912, -1.0
        %v914 = vmul.f32 %v832, %v832
        %v915 = vmin.f32 16.0, %v914
        %v916 = vmul.f32 %v915, 2.1237322e-06
        %v917 = vadd.f32 %v916, 0.00028619796
        %v918 = vmul.f32 %v915, %v917
        %v919 = vadd.f32 %v918, 0.0036580483
        %v920 = vmul.f32 %v915, %v919
        %v921 = vadd.f32 %v920, 0.05243302
        %v922 = vmul.f32 %v915, %v921
        %v923 = vadd.f32 %v922, 0.18741608
        %v924 = vmul.f32 %v915, %v923
        %v925 = vadd.f32 %v924, 1.1283791
        %v926 = vmul.f32 %v832, %v925
        %v927 = vmul.f32 %v915, 3.8918573e-05
        %v928 = vadd.f32 %v927, 0.001143296
        %v929 = vmul.f32 %v915, %v928
        %v930 = vadd.f32 %v929, 0.014752088
        %v931 = vmul.f32 %v915, %v930
        %v932 = vadd.f32 %v931, 0.112945676
        %v933 = vmul.f32 %v915, %v932
        %v934 = vadd.f32 %v933, 0.4994258
        %v935 = vmul.f32 %v915, %v934
        %v936 = vadd.f32 %v935, 1.0
        %v937 = vrcp.pop %v936
        %v938 = vmul.f32 %v936, %v937
        %v939 = vsub.f32 1.0, %v938
        %v940 = vmul.f32 %v937, %v939
        %v941 = vadd.f32 %v937, %v940
        %vm942 = vweird.f32 %v936
        %vm943 = vweird.f32 %v937
        %vm944 = vmor %vm942, %vm943
        %v945 = vsel %vm944, %v937, %v941
        %v946 = vand.u32 2147483647, %v936
        %vm947 = vcmp.eq.f32.partialorder %v946, 8.507059e+37
        %v948 = vand.u32 %v936, 2147483648
        %v949 = vor.u32 1.1754944e-38, %v948
        %v950 = vsel %vm947, %v949, %v945
        %v951 = vmul.f32 %v926, %v950
        %v952 = vmin.f32 %v951, 1.0
        %v953 = vmax.f32 %v952, -1.0
        %v954 = vmul.f32 %v833, %v833
        %v955 = vmin.f32 16.0, %v954
        %v956 = vmul.f32 %v955, 2.1237322e-06
        %v957 = vadd.f32 %v956, 0.00028619796
        %v958 = vmul.f32 %v955, %v957
        %v959 = vadd.f32 %v958, 0.0036580483
        %v960 = vmul.f32 %v955, %v959
        %v961 = vadd.f32 %v960, 0.05243302
        %v962 = vmul.f32 %v955, %v961
        %v963 = vadd.f32 %v962, 0.18741608
        %v964 = vmul.f32 %v955, %v963
        %v965 = vadd.f32 %v964, 1.1283791
        %v966 = vmul.f32 %v833, %v965
        %v967 = vmul.f32 %v955, 3.8918573e-05
        %v968 = vadd.f32 %v967, 0.001143296
        %v969 = vmul.f32 %v955, %v968
        %v970 = vadd.f32 %v969, 0.014752088
        %v971 = vmul.f32 %v955, %v970
        %v972 = vadd.f32 %v971, 0.112945676
        %v973 = vmul.f32 %v955, %v972
        %v974 = vadd.f32 %v973, 0.4994258
        %v975 = vmul.f32 %v955, %v974
        %v976 = vadd.f32 %v975, 1.0
        %v977 = vrcp.pop %v976
        %v978 = vmul.f32 %v976, %v977
        %v979 = vsub.f32 1.0, %v978
        %v980 = vmul.f32 %v977, %v979
        %v981 = vadd.f32 %v977, %v980
        %vm982 = vweird.f32 %v976
        %vm983 = vweird.f32 %v977
        %vm984 = vmor %vm982, %vm983
        %v985 = vsel %vm984, %v977, %v981
        %v986 = vand.u32 2147483647, %v976
        %vm987 = vcmp.eq.f32.partialorder %v986, 8.507059e+37
        %v988 = vand.u32 %v976, 2147483648
        %v989 = vor.u32 1.1754944e-38, %v988
        %v990 = vsel %vm987, %v989, %v985
        %v991 = vmul.f32 %v966, %v990
        %v992 = vmin.f32 %v991, 1.0
        %v993 = vmax.f32 %v992, -1.0
        %v994 = vadd.f32 %v873, 1.0
        %v995 = vadd.f32 %v913, 1.0
        %v996 = vadd.f32 %v953, 1.0
        %v997 = vadd.f32 %v993, 1.0
        %v998 = vmul.f32 %v826, %v994
        %v999 = vmul.f32 %v827, %v995
        %v1000 = vmul.f32 %v828, %v996
        %v1001 = vmul.f32 %v829, %v997
        %v1002 = vld [vmem:[%s4] sm:$0xf]
        %v1003 = vpack.c.bf16 %v999, %v998
        %v1004 = vpack.c.bf16 %v1001, %v1000
        %v1005 = vld [vmem:[%s5] sm:$0xff]
        %1007 = vset.pattern.permute.xlu0 0
        %1008 = vperm.xlu0 %1007, %v1005
        %v1009 = vpop.permute.xlu0 %1008
        %v1012 = vsel %vm714, %v1002, 0
        %1014 = vmatpush.bf16.msra.mxu0 0
        %1015 = vmatpush.bf16.msra.mxu0 0
        %1016 = vmatpush.bf16.msra.mxu0 0
        %1017 = vmatpush.bf16.msra.mxu0 0
        %1018 = vmatpush.bf16.msra.mxu0 0
        %1019 = vmatpush.bf16.msra.mxu0 0
        %1020 = vmatpush.bf16.msra.mxu0 %v1004
        %1021 = vmatpush.bf16.msra.mxu0 %v1003
        %1022 = vmatmul.bf16.gmra.mxu0 %v1012
        %v1023 = vpop.f32.mrf.mxu0
        %v1024 = vadd.f32 %v1009, %v1023
        %v1025 = vpop.f32.mrf.mxu0
        %1026 = vdwg.mxu0
        %v1027 = vmul.f32 %v1024, 0.5
        %v1028 = vmul.f32 %v1024, 0.70710677
        %v1029 = vmul.f32 %v1028, %v1028
        %v1030 = vmin.f32 16.0, %v1029
        %v1031 = vmul.f32 %v1030, 2.1237322e-06
        %v1032 = vadd.f32 %v1031, 0.00028619796
        %v1033 = vmul.f32 %v1030, %v1032
        %v1034 = vadd.f32 %v1033, 0.0036580483
        %v1035 = vmul.f32 %v1030, %v1034
        %v1036 = vadd.f32 %v1035, 0.05243302
        %v1037 = vmul.f32 %v1030, %v1036
        %v1038 = vadd.f32 %v1037, 0.18741608
        %v1039 = vmul.f32 %v1030, %v1038
        %v1040 = vadd.f32 %v1039, 1.1283791
        %v1041 = vmul.f32 %v1028, %v1040
        %v1042 = vmul.f32 %v1030, 3.8918573e-05
        %v1043 = vadd.f32 %v1042, 0.001143296
        %v1044 = vmul.f32 %v1030, %v1043
        %v1045 = vadd.f32 %v1044, 0.014752088
        %v1046 = vmul.f32 %v1030, %v1045
        %v1047 = vadd.f32 %v1046, 0.112945676
        %v1048 = vmul.f32 %v1030, %v1047
        %v1049 = vadd.f32 %v1048, 0.4994258
        %v1050 = vmul.f32 %v1030, %v1049
        %v1051 = vadd.f32 %v1050, 1.0
        %v1052 = vrcp.pop %v1051
        %v1053 = vmul.f32 %v1051, %v1052
        %v1054 = vsub.f32 1.0, %v1053
        %v1055 = vmul.f32 %v1052, %v1054
        %v1056 = vadd.f32 %v1052, %v1055
        %vm1057 = vweird.f32 %v1051
        %vm1058 = vweird.f32 %v1052
        %vm1059 = vmor %vm1057, %vm1058
        %v1060 = vsel %vm1059, %v1052, %v1056
        %v1061 = vand.u32 2147483647, %v1051
        %vm1062 = vcmp.eq.f32.partialorder %v1061, 8.507059e+37
        %v1063 = vand.u32 %v1051, 2147483648
        %v1064 = vor.u32 1.1754944e-38, %v1063
        %v1065 = vsel %vm1062, %v1064, %v1060
        %v1066 = vmul.f32 %v1041, %v1065
        %v1067 = vmin.f32 %v1066, 1.0
        %v1068 = vmax.f32 %v1067, -1.0
        %v1069 = vadd.f32 %v1068, 1.0
        %v1070 = vmul.f32 %v1027, %v1069
        %v1071 = vpack.c.bf16 %v305, %v305
        %v1072 = vpack.c.bf16 %v306, %v306
        %v1073 = vld [vmem:[%s6] sm:$0xf]
        %v1074 = vld [vmem:[%s7] sm:$0xff]
        %1076 = vset.pattern.permute.xlu0 0
        %1077 = vperm.xlu0 %1076, %v1074
        %v1078 = vpop.permute.xlu0 %1077
        %1082 = vrot.lane.b32.xlu0 %v1071, 117
        %v1083 = vpop.permute.xlu0 %1082
        %1084 = vrot.lane.b32.xlu0 %v1072, 117
        %v1085 = vpop.permute.xlu0 %1084
        %vm1086 = vcmask 957440
        %v1087 = vsel %vm1086, %v1083, %v1085
        %vm1088 = vcmask 64512
        %v1090 = vsel %vm1088, %v1073, 0
        %v1093 = vsel %vm497, %v1087, 0
        %1095 = vmatpush.bf16.msra.mxu0 0
        %1096 = vmatpush.bf16.msra.mxu0 0
        %1097 = vmatpush.bf16.msra.mxu0 0
        %1098 = vmatpush.bf16.msra.mxu0 0
        %1099 = vmatpush.bf16.msra.mxu0 0
        %1100 = vmatpush.bf16.msra.mxu0 0
        %1101 = vmatpush.bf16.msra.mxu0 0
        %1102 = vmatpush.bf16.msra.mxu0 %v1093
        %1103 = vmatmul.bf16.gmra.mxu0 %v1090
        %v1104 = vpop.f32.mrf.mxu0
        %v1105 = vadd.f32 %v1078, %v1104
        %v1106 = vpop.f32.mrf.mxu0
        %1107 = vdwg.mxu0
        %v1108 = vadd.f32 %v1070, %v1105
        %1109 = vst [vmem:[%s298] sm:$0xff] %v1108
        %s1110 = sand.u32 %s203, 1
        %s1111 = scalar_lea.sflag [#allocation3], %s1110
        %s1112 = sand.u32 %s203, 1
        %s1113 = smul.addr %s1112, 8
        %s1114 = scalar_lea.vmem [#allocation2], %s1113
        // Predicated region
        $region53: #{multi_scale_block.1} parent=51 // pred_check
          %p1115 = pneg %p213
        $region54: #{multi_scale_block.1} parent=51 // pred_check_branch
          %1117 = sbr.rel (%p1115) target = $region56
        $region55: #{multi_scale_block.1} parent=51 // pred_region
          %1119 = vsyncadd %s1111, 0
          %s1120 = smul.addr %s22, 8
          %s1121 = scalar_lea.hbm %s8, %s1120
          %s1123 = sshll.u32 %s1114, 4
          %s1124 = int_to_ptr.vmem [resolvable:$true] %s1123
          %s1125 = sshll.u32 %s1121, 4
          %s1126 = int_to_ptr.hbm [resolvable:$true] %s1125
          %1128 = dma.vmem_to_hbm [thread:$0]  %s1124, 128, %s1126, %s1111
        $region56: #{multi_scale_block.1} parent=51 // pred_fallthru
          _
      $region52: #{multi_scale_block.1} parent=5 // pred_fallthru
        _
      %p1129 = scmp.le.s32.totalorder 2, %s17
      // Predicated region
      $region57: #{multi_scale_block.1} parent=5 // pred_check
        %p1130 = pneg %p1129
      $region58: #{multi_scale_block.1} parent=5 // pred_check_branch
        %1132 = sbr.rel (%p1130) target = $region60
      $region59: #{multi_scale_block.1} parent=5 // pred_region
        %s1133 = ssub.s32 %s17, 2
        // Predicated region
        $region61: #{multi_scale_block.1} parent=59 // pred_check
          %p1134 = pneg %p219
        $region62: #{multi_scale_block.1} parent=59 // pred_check_branch
          %1136 = sbr.rel (%p1134) target = $region64
        $region63: #{multi_scale_block.1} parent=59 // pred_region
          %s1137 = sand.u32 %s204, 1
          %s1138 = scalar_lea.sflag [#allocation3], %s1137
          %s1139 = sand.u32 %s204, 1
          %s1140 = smul.addr %s1139, 8
          %s1141 = scalar_lea.vmem [#allocation2], %s1140
          %1143 = dma.done %s1138, 128
        $region64: #{multi_scale_block.1} parent=59 // pred_fallthru
          _
      $region60: #{multi_scale_block.1} parent=5 // pred_fallthru
        _
    $region6: #{multi_scale_block.1} parent=1 // loop_footer
      %s21 = sadd.s32 1, %s17
    $region7: #{multi_scale_block.1} parent=1 // loop_footer_branch
      %16 = sbr.rel target = $region3
    $region8: #{multi_scale_block.1} parent=1 // loop_exit
      _
    %1144 = vsyncpa [#allocation3], 1
    %s1145 = scalar_lea.sflag [#allocation3], 1
    %1146 = vsyncpa %s1145, 1

</llo_original>
